<compile_context>
chip_gen: v5e
topology: v5e:2x2
jax: 0.10.0
libtpu: 0.0.40
codegen_flags: <defaults>
</compile_context>

<pallas_src>
import functools

import jax
import jax.numpy as jnp
from jax.experimental import pallas as pl
from jax.experimental.pallas import tpu as pltpu

_LANE = 128


def _round_up(x, m):
    return ((x + m - 1) // m) * m


def _sublane(dtype):
    # f32 -> 8, bf16 -> 16 (packed sublanes)
    return 8 * (4 // jnp.dtype(dtype).itemsize)


def _cross_network_kernel(x_ref, wt_ref, b_ref, o_ref, *, num_layers):
    # x_ref : (TB, Dp)      batch tile
    # wt_ref: (L, Dp, Dp)   pre-transposed, lane-padded weights (Wt[l] == W_l.T)
    # b_ref : (L, 1, Dp)    lane-padded biases
    # o_ref : (TB, Dp)      output tile
    mxu_dtype = wt_ref.dtype
    x0 = x_ref[...].astype(jnp.float32)
    xi = x0
    for l in range(num_layers):  # static & small -> unrolled, one MXU matmul each
        lin = jnp.dot(xi.astype(mxu_dtype), wt_ref[l],
                      preferred_element_type=jnp.float32)
        lin = lin + b_ref[l].astype(jnp.float32)  # (1, Dp) broadcast
        xi = x0 * lin + xi                        # residual math in f32
    o_ref[...] = xi.astype(o_ref.dtype)


def prepare_cross_params(weights, biases, *, param_dtype=None):
    """One-time parameter prep (hoisted out of the forward path).

    weights: (L, D, D) in PyTorch nn.Linear (out, in) layout; biases: (L, D).
    Returns (wt, bias) with wt transposed to (in, out) layout, D zero-padded to
    a multiple of 128, and optionally cast (e.g. bf16 for v6e/v7x MXU).
    """
    L, D, D2 = weights.shape
    assert D == D2 and biases.shape == (L, D)
    d_pad = _round_up(D, _LANE)
    wt = jnp.swapaxes(weights, 1, 2)          # (L, in, out)  == W_l.T per layer
    bias = biases
    if param_dtype is not None:
        wt = wt.astype(param_dtype)
        bias = bias.astype(param_dtype)
    wt = jnp.pad(wt, ((0, 0), (0, d_pad - D), (0, d_pad - D)))
    bias = jnp.pad(bias, ((0, 0), (0, d_pad - D))).reshape(L, 1, d_pad)
    return wt, bias


def cross_network(x, wt, bias, *, tile_b=None, vmem_budget_bytes=24 * 1024 * 1024):
    """x: (B, D). wt/bias: outputs of prepare_cross_params()."""
    B, D = x.shape
    L, d_pad, d_pad2 = wt.shape
    assert d_pad == d_pad2 and d_pad % _LANE == 0 and D <= d_pad
    assert bias.shape == (L, 1, d_pad)

    itemsize_x = jnp.dtype(x.dtype).itemsize
    itemsize_w = jnp.dtype(wt.dtype).itemsize
    sub = _sublane(x.dtype)

    # Weights/bias are single-buffered and resident for the whole grid.
    fixed = L * d_pad * d_pad * itemsize_w + L * d_pad * itemsize_w
    # TODO(synk): for very large D (>~1024) or many layers, add a K-tiled
    # 'arbitrary' grid axis with an f32 VMEM accumulator instead of keeping the
    # whole (L, Dp, Dp) weight tensor resident.
    # Per batch row: x tile + out tile (double-buffered) + ~3 f32 live temps.
    per_row = 2 * 2 * d_pad * itemsize_x + 3 * d_pad * 4

    if tile_b is None:
        avail = max(vmem_budget_bytes - fixed, per_row * sub)
        tile_b = min(int(avail // per_row), 1024)
        if tile_b >= _LANE:
            tile_b = (tile_b // _LANE) * _LANE       # keep MXU M passes full
        else:
            tile_b = max(sub, (tile_b // sub) * sub)
        tile_b = min(tile_b, _round_up(B, sub))
    if tile_b % sub != 0:
        raise ValueError(f"tile_b={tile_b} must be a multiple of {sub} for {x.dtype}")

    b_pad = _round_up(B, tile_b)
    x_in = x
    if b_pad != B or d_pad != D:
        x_in = jnp.pad(x, ((0, b_pad - B), (0, d_pad - D)))

    grid = (b_pad // tile_b,)
    # Explicit scoped-VMEM limit with headroom (raises v5e's 16 MiB default,
    # stays inside v7x's 64 MiB physical VMEM).
    vmem_limit = int(min(max(1.5 * (fixed + per_row * tile_b), 32 * 1024 * 1024),
                         64 * 1024 * 1024))

    out = pl.pallas_call(
        functools.partial(_cross_network_kernel, num_layers=L),
        out_shape=jax.ShapeDtypeStruct((b_pad, d_pad), x.dtype),
        grid_spec=pltpu.PrefetchScalarGridSpec(
            num_scalar_prefetch=0,
            grid=grid,
            in_specs=[
                pl.BlockSpec((tile_b, d_pad), lambda i: (i, 0)),
                # Constant block index across the grid -> single buffer to
                # halve weight VMEM residency.
                pl.BlockSpec((L, d_pad, d_pad), lambda i: (0, 0, 0),
                             pipeline_mode=pl.Buffered(1)),
                pl.BlockSpec((L, 1, d_pad), lambda i: (0, 0, 0),
                             pipeline_mode=pl.Buffered(1)),
            ],
            out_specs=pl.BlockSpec((tile_b, d_pad), lambda i: (i, 0)),
        ),
        compiler_params=pltpu.CompilerParams(
            dimension_semantics=("parallel",),
            vmem_limit_bytes=vmem_limit,
        ),
    )(x_in, wt, bias)

    if b_pad != B or d_pad != D:
        out = out[:B, :D]
    return out


def cross_network_ref(x, weights, biases, *, mxu_dtype=None):
    """Pure-JAX reference matching the PyTorch forward (weights in (out,in) layout)."""
    x0 = x.astype(jnp.float32)
    xi = x0
    for l in range(weights.shape[0]):
        lhs = xi if mxu_dtype is None else xi.astype(mxu_dtype).astype(jnp.float32)
        lin = lhs @ weights[l].astype(jnp.float32).T + biases[l].astype(jnp.float32)
        xi = x0 * lin + xi
    return xi


if __name__ == "__main__":
    key = jax.random.PRNGKey(0)
    kx, kw, kb, kx2 = jax.random.split(key, 4)

    # ---- small f32 check (tight tolerance) --------------------------------
    B, D, L = 8, 32, 3
    bound = 1.0 / (D ** 0.5)
    x = jax.random.normal(kx, (B, D), dtype=jnp.float32)
    weights = jax.random.uniform(kw, (L, D, D), jnp.float32, -bound, bound)
    biases = jax.random.uniform(kb, (L, D), jnp.float32, -bound, bound)

    wt, bias = prepare_cross_params(weights, biases)        # hoisted, one-time
    out = jax.block_until_ready(cross_network(x, wt, bias))
    ref = cross_network_ref(x, weights, biases)
    assert out.shape == (B, D)
    assert jnp.allclose(out, ref, atol=1e-4, rtol=1e-4), "f32 mismatch vs reference"

    # ---- bf16 MXU operands + multi-step batch grid -------------------------
    B2 = 256
    x2 = jax.random.normal(kx2, (B2, D), dtype=jnp.float32).astype(jnp.bfloat16)
    wt16, bias16 = prepare_cross_params(weights, biases, param_dtype=jnp.bfloat16)
    out2 = jax.block_until_ready(cross_network(x2, wt16, bias16, tile_b=64))  # grid=(4,)
    ref2 = cross_network_ref(x2,
                             weights.astype(jnp.bfloat16),
                             biases.astype(jnp.bfloat16),
                             mxu_dtype=jnp.bfloat16)
    assert out2.shape == (B2, D)
    assert jnp.allclose(out2.astype(jnp.float32), ref2, atol=2e-2, rtol=2e-2), "bf16 mismatch"

    print("KERNEL_OK")
</pallas_src>

<mosaic_0001>
module attributes {stable_mosaic.version = 11 : i64} {
  func.func @_cross_network_kernel(%arg0: i32, %arg1: memref<8x128xf32, #tpu.memory_space<vmem>>, %arg2: memref<3x128x128xf32, #tpu.memory_space<vmem>>, %arg3: memref<3x1x128xf32, #tpu.memory_space<vmem>>, %arg4: memref<8x128xf32, #tpu.memory_space<vmem>>) attributes {dimension_semantics = [#tpu.dimension_semantics<parallel>], iteration_bounds = array<i64: 1>, scalar_prefetch = 0 : i64, scratch_operands = 0 : i64, tpu.core_type = #tpu.core_type<tc>, window_params = [{transform_indices = @transform_0, window_bounds = array<i64: 8, 128>}, {pipeline_mode = #tpu.pipeline_mode<synchronous>, transform_indices = @transform_1, window_bounds = array<i64: 3, 128, 128>}, {pipeline_mode = #tpu.pipeline_mode<synchronous>, transform_indices = @transform_2, window_bounds = array<i64: 3, 1, 128>}, {transform_indices = @transform_3, window_bounds = array<i64: 8, 128>}]} {
    %c0 = arith.constant 0 : index
    %c0_0 = arith.constant 0 : index
    %0 = vector.load %arg1[%c0, %c0_0] : memref<8x128xf32, #tpu.memory_space<vmem>>, vector<8x128xf32>
    %c0_1 = arith.constant 0 : index
    %c0_2 = arith.constant 0 : index
    %c0_3 = arith.constant 0 : index
    %1 = vector.load %arg2[%c0_1, %c0_2, %c0_3] : memref<3x128x128xf32, #tpu.memory_space<vmem>>, vector<1x128x128xf32>
    %2 = vector.shape_cast %1 : vector<1x128x128xf32> to vector<128x128xf32>
    %cst = arith.constant dense<0.000000e+00> : vector<8x128xf32>
    %3 = tpu.matmul %0, %2, %cst {dimension_numbers = #tpu.dot_dimension_numbers<[1], [0], [0], [1], [0, 0, 1, 1], [], []>} : vector<8x128xf32>, vector<128x128xf32>, vector<8x128xf32> -> vector<8x128xf32>
    %c0_4 = arith.constant 0 : index
    %c0_5 = arith.constant 0 : index
    %c0_6 = arith.constant 0 : index
    %4 = vector.load %arg3[%c0_4, %c0_5, %c0_6] : memref<3x1x128xf32, #tpu.memory_space<vmem>>, vector<1x1x128xf32>
    %5 = vector.shape_cast %4 : vector<1x1x128xf32> to vector<1x128xf32>
    %6 = vector.broadcast %5 : vector<1x128xf32> to vector<8x128xf32>
    %7 = arith.addf %3, %6 : vector<8x128xf32>
    %8 = arith.mulf %0, %7 : vector<8x128xf32>
    %9 = arith.addf %8, %0 : vector<8x128xf32>
    %c1 = arith.constant 1 : index
    %c0_7 = arith.constant 0 : index
    %c0_8 = arith.constant 0 : index
    %10 = vector.load %arg2[%c1, %c0_7, %c0_8] : memref<3x128x128xf32, #tpu.memory_space<vmem>>, vector<1x128x128xf32>
    %11 = vector.shape_cast %10 : vector<1x128x128xf32> to vector<128x128xf32>
    %cst_9 = arith.constant dense<0.000000e+00> : vector<8x128xf32>
    %12 = tpu.matmul %9, %11, %cst_9 {dimension_numbers = #tpu.dot_dimension_numbers<[1], [0], [0], [1], [0, 0, 1, 1], [], []>} : vector<8x128xf32>, vector<128x128xf32>, vector<8x128xf32> -> vector<8x128xf32>
    %c1_10 = arith.constant 1 : index
    %c0_11 = arith.constant 0 : index
    %c0_12 = arith.constant 0 : index
    %13 = vector.load %arg3[%c1_10, %c0_11, %c0_12] : memref<3x1x128xf32, #tpu.memory_space<vmem>>, vector<1x1x128xf32>
    %14 = vector.shape_cast %13 : vector<1x1x128xf32> to vector<1x128xf32>
    %15 = vector.broadcast %14 : vector<1x128xf32> to vector<8x128xf32>
    %16 = arith.addf %12, %15 : vector<8x128xf32>
    %17 = arith.mulf %0, %16 : vector<8x128xf32>
    %18 = arith.addf %17, %9 : vector<8x128xf32>
    %c2 = arith.constant 2 : index
    %c0_13 = arith.constant 0 : index
    %c0_14 = arith.constant 0 : index
    %19 = vector.load %arg2[%c2, %c0_13, %c0_14] : memref<3x128x128xf32, #tpu.memory_space<vmem>>, vector<1x128x128xf32>
    %20 = vector.shape_cast %19 : vector<1x128x128xf32> to vector<128x128xf32>
    %cst_15 = arith.constant dense<0.000000e+00> : vector<8x128xf32>
    %21 = tpu.matmul %18, %20, %cst_15 {dimension_numbers = #tpu.dot_dimension_numbers<[1], [0], [0], [1], [0, 0, 1, 1], [], []>} : vector<8x128xf32>, vector<128x128xf32>, vector<8x128xf32> -> vector<8x128xf32>
    %c2_16 = arith.constant 2 : index
    %c0_17 = arith.constant 0 : index
    %c0_18 = arith.constant 0 : index
    %22 = vector.load %arg3[%c2_16, %c0_17, %c0_18] : memref<3x1x128xf32, #tpu.memory_space<vmem>>, vector<1x1x128xf32>
    %23 = vector.shape_cast %22 : vector<1x1x128xf32> to vector<1x128xf32>
    %24 = vector.broadcast %23 : vector<1x128xf32> to vector<8x128xf32>
    %25 = arith.addf %21, %24 : vector<8x128xf32>
    %26 = arith.mulf %0, %25 : vector<8x128xf32>
    %27 = arith.addf %26, %18 : vector<8x128xf32>
    %c0_19 = arith.constant 0 : index
    %c0_20 = arith.constant 0 : index
    %28 = vector.load %arg4[%c0_19, %c0_20] : memref<8x128xf32, #tpu.memory_space<vmem>>, vector<8x128xf32>
    tpu.vector_store %arg4[%c0_19, %c0_20], %27 {strides = array<i32>} : memref<8x128xf32, #tpu.memory_space<vmem>>, vector<8x128xf32>,
    return
  }
  func.func @transform_0(%arg0: i32) -> (i32, i32) {
    %c0_i32 = arith.constant 0 : i32
    %c0_i32_0 = arith.constant 0 : i32
    return %arg0, %c0_i32 : i32, i32
  }
  func.func @transform_1(%arg0: i32) -> (i32, i32, i32) {
    %c0_i32 = arith.constant 0 : i32
    %c0_i32_0 = arith.constant 0 : i32
    %c0_i32_1 = arith.constant 0 : i32
    %c0_i32_2 = arith.constant 0 : i32
    return %c0_i32, %c0_i32_0, %c0_i32_1 : i32, i32, i32
  }
  func.func @transform_2(%arg0: i32) -> (i32, i32, i32) {
    %c0_i32 = arith.constant 0 : i32
    %c0_i32_0 = arith.constant 0 : i32
    %c0_i32_1 = arith.constant 0 : i32
    %c0_i32_2 = arith.constant 0 : i32
    return %c0_i32, %c0_i32_0, %c0_i32_1 : i32, i32, i32
  }
  func.func @transform_3(%arg0: i32) -> (i32, i32) {
    %c0_i32 = arith.constant 0 : i32
    %c0_i32_0 = arith.constant 0 : i32
    return %arg0, %c0_i32 : i32, i32
  }
}

</mosaic_0001>

<llo_original>
// kernel: tpu_custom_call.1
$region0: #{tpu_custom_call.1}
  #allocation0 [shape = 'u32[]', space=smem, size = 0x4, offset = 0x4, fixed_abs, tag = 'smem constant byte address 0x4 - core index']
  #allocation1 [shape = 'u32[72,128]{1,0:T(1,128)}', space=vmem, size = 0x9000, scoped, tag = 'internal scratch']
  %s0 = inlined_call_operand.hbm [shape: f32[8,128], index: 0, kind: input, shape index: {}]
  %s1 = inlined_call_operand.hbm [shape: f32[3,128,128], index: 1, kind: input, shape index: {}]
  %s2 = inlined_call_operand.hbm [shape: f32[3,1,128], index: 2, kind: input, shape index: {}]
  %s3 = inlined_call_operand.hbm [shape: f32[8,128], index: 3, kind: output, shape index: {}]
  %s4 = sld [smem:[#allocation0]]
  $region34: #{tpu_custom_call.1} parent=0
    _
  %s6 = ssub.s32 1, %s4
  %s7 = scalar_select 0, %s6, %s4
  $region1: #{tpu_custom_call.1} parent=0
    #allocation2 [shape = 'u8[4096]{0}', space=vmem, size = 0x1000, scoped, tag = 'input window, operand 0, single buffered']
    #allocation3 [shape = 's32[1]{0}', space=sflag, size = 0x4, scoped, tag = 'scoped memory for tpu_custom_call.1']
    #allocation4 [shape = 's32[1]{0}', space=sflag, size = 0x4, scoped, tag = 'scoped memory for tpu_custom_call.1']
    #allocation5 [shape = 'u8[196608]{0}', space=vmem, size = 0x30000, scoped, tag = 'input window, operand 1, single buffered']
    #allocation6 [shape = 's32[1]{0}', space=sflag, size = 0x4, scoped, tag = 'scoped memory for tpu_custom_call.1']
    #allocation7 [shape = 'u8[1536]{0}', space=vmem, size = 0x800, scoped, tag = 'input window, operand 2, single buffered']
    #allocation8 [shape = 'u8[4096]{0}', space=vmem, size = 0x1000, scoped, tag = 'output window, operand 0, single buffered']
    %8 = vsyncpa [#allocation3], 0
    %9 = vsyncpa [#allocation6], 0
    %10 = vsyncpa [#allocation4], 0
    // Predicated region
    $region2: #{tpu_custom_call.1} parent=1 // pred_check
      _
    $region3: #{tpu_custom_call.1} parent=1 // pred_check_branch
      %12 = sbr.rel (0) target = $region5
    $region4: #{tpu_custom_call.1} parent=1 // pred_region
      %14 = vsyncadd [#allocation3], 0
      %s16 = sshll.u32 %s0, 4
      %s17 = int_to_ptr.hbm [resolvable:$true] %s16
      %s18 = sshll.u32 [#allocation2], 4
      %s19 = int_to_ptr.vmem [resolvable:$true] %s18
      %21 = dma.hbm_to_vmem [thread:$0]  %s17, 128, %s19, [#allocation3]
    $region5: #{tpu_custom_call.1} parent=1 // pred_fallthru
      _
    // Predicated region
    $region6: #{tpu_custom_call.1} parent=1 // pred_check
      _
    $region7: #{tpu_custom_call.1} parent=1 // pred_check_branch
      %23 = sbr.rel (0) target = $region9
    $region8: #{tpu_custom_call.1} parent=1 // pred_region
      %25 = vsyncadd [#allocation6], 0
      %s26 = sshll.u32 %s1, 4
      %s27 = int_to_ptr.hbm [resolvable:$true] %s26
      %s28 = sshll.u32 [#allocation5], 4
      %s29 = int_to_ptr.vmem [resolvable:$true] %s28
      %34 = dma.hbm_to_vmem [thread:$0]  %s27, 6144, %s29, [#allocation6], 128, 128, 8
    $region9: #{tpu_custom_call.1} parent=1 // pred_fallthru
      _
    // Predicated region
    $region10: #{tpu_custom_call.1} parent=1 // pred_check
      _
    $region11: #{tpu_custom_call.1} parent=1 // pred_check_branch
      %36 = sbr.rel (0) target = $region13
    $region12: #{tpu_custom_call.1} parent=1 // pred_region
      %38 = vsyncadd [#allocation6], 0
      %s39 = sshll.u32 %s2, 4
      %s40 = int_to_ptr.hbm [resolvable:$true] %s39
      %s41 = sshll.u32 [#allocation7], 4
      %s42 = int_to_ptr.vmem [resolvable:$true] %s41
      %47 = dma.hbm_to_vmem [thread:$0]  %s40, 48, %s42, [#allocation6], 16, 16, 1
    $region13: #{tpu_custom_call.1} parent=1 // pred_fallthru
      _
    // Predicated region
    $region14: #{tpu_custom_call.1} parent=1 // pred_check
      _
    $region15: #{tpu_custom_call.1} parent=1 // pred_check_branch
      %49 = sbr.rel (0) target = $region17
    $region16: #{tpu_custom_call.1} parent=1 // pred_region
      %51 = dma.done [#allocation3], 128
    $region17: #{tpu_custom_call.1} parent=1 // pred_fallthru
      _
    // Predicated region
    $region18: #{tpu_custom_call.1} parent=1 // pred_check
      _
    $region19: #{tpu_custom_call.1} parent=1 // pred_check_branch
      %53 = sbr.rel (0) target = $region21
    $region20: #{tpu_custom_call.1} parent=1 // pred_region
      %55 = dma.done [#allocation6], 6144
    $region21: #{tpu_custom_call.1} parent=1 // pred_fallthru
      _
    // Predicated region
    $region22: #{tpu_custom_call.1} parent=1 // pred_check
      _
    $region23: #{tpu_custom_call.1} parent=1 // pred_check_branch
      %57 = sbr.rel (0) target = $region25
    $region24: #{tpu_custom_call.1} parent=1 // pred_region
      %59 = dma.done [#allocation6], 48
    $region25: #{tpu_custom_call.1} parent=1 // pred_fallthru
      _
    %v60 = vld [vmem:[#allocation2] sm:$0xff]
    %v61 = vld [vmem:[#allocation5] sm:$0xff]
    %v62 = vld [vmem:[#allocation5 + $0x8] sm:$0xff]
    %v63 = vld [vmem:[#allocation5 + $0x10] sm:$0xff]
    %v64 = vld [vmem:[#allocation5 + $0x18] sm:$0xff]
    %v65 = vld [vmem:[#allocation5 + $0x20] sm:$0xff]
    %v66 = vld [vmem:[#allocation5 + $0x28] sm:$0xff]
    %v67 = vld [vmem:[#allocation5 + $0x30] sm:$0xff]
    %v68 = vld [vmem:[#allocation5 + $0x38] sm:$0xff]
    %v69 = vld [vmem:[#allocation5 + $0x40] sm:$0xff]
    %v70 = vld [vmem:[#allocation5 + $0x48] sm:$0xff]
    %v71 = vld [vmem:[#allocation5 + $0x50] sm:$0xff]
    %v72 = vld [vmem:[#allocation5 + $0x58] sm:$0xff]
    %v73 = vld [vmem:[#allocation5 + $0x60] sm:$0xff]
    %v74 = vld [vmem:[#allocation5 + $0x68] sm:$0xff]
    %v75 = vld [vmem:[#allocation5 + $0x70] sm:$0xff]
    %v76 = vld [vmem:[#allocation5 + $0x78] sm:$0xff]
    %v77 = vld [vmem:[#allocation7] sm:$0x1]
    %v79 = vperm.slane %v77, 0
    %81 = vmatpush.msra.mxu0 %v76
    %82 = vmatpush.msra.mxu0 %v75
    %83 = vmatpush.msra.mxu0 %v74
    %84 = vmatpush.msra.mxu0 %v73
    %85 = vmatpush.msra.mxu0 %v72
    %86 = vmatpush.msra.mxu0 %v71
    %87 = vmatpush.msra.mxu0 %v70
    %88 = vmatpush.msra.mxu0 %v69
    %89 = vmatpush.msra.mxu0 %v68
    %90 = vmatpush.msra.mxu0 %v67
    %91 = vmatpush.msra.mxu0 %v66
    %92 = vmatpush.msra.mxu0 %v65
    %93 = vmatpush.msra.mxu0 %v64
    %94 = vmatpush.msra.mxu0 %v63
    %95 = vmatpush.msra.mxu0 %v62
    %96 = vmatpush.msra.mxu0 %v61
    %97 = vmatmul.f32.gmra.mxu0 %v60
    %v98 = vpop.f32.mrf.mxu0
    %v99 = vadd.f32 %v79, %v98
    %100 = vdwg.mxu0
    %v101 = vmul.f32 %v60, %v99
    %v102 = vadd.f32 %v101, %v60
    %s103 = scalar_lea.vmem [#allocation5], 128
    %v104 = vld [vmem:[%s103] sm:$0xff]
    %v105 = vld [vmem:[%s103 + $0x8] sm:$0xff]
    %v106 = vld [vmem:[%s103 + $0x10] sm:$0xff]
    %v107 = vld [vmem:[%s103 + $0x18] sm:$0xff]
    %v108 = vld [vmem:[%s103 + $0x20] sm:$0xff]
    %v109 = vld [vmem:[%s103 + $0x28] sm:$0xff]
    %v110 = vld [vmem:[%s103 + $0x30] sm:$0xff]
    %v111 = vld [vmem:[%s103 + $0x38] sm:$0xff]
    %v112 = vld [vmem:[%s103 + $0x40] sm:$0xff]
    %v113 = vld [vmem:[%s103 + $0x48] sm:$0xff]
    %v114 = vld [vmem:[%s103 + $0x50] sm:$0xff]
    %v115 = vld [vmem:[%s103 + $0x58] sm:$0xff]
    %v116 = vld [vmem:[%s103 + $0x60] sm:$0xff]
    %v117 = vld [vmem:[%s103 + $0x68] sm:$0xff]
    %v118 = vld [vmem:[%s103 + $0x70] sm:$0xff]
    %v119 = vld [vmem:[%s103 + $0x78] sm:$0xff]
    %s120 = scalar_lea.vmem [#allocation7], 1
    %v121 = vld [vmem:[%s120] sm:$0x1]
    %v123 = vperm.slane %v121, 0
    %125 = vmatpush.msra.mxu0 %v119
    %126 = vmatpush.msra.mxu0 %v118
    %127 = vmatpush.msra.mxu0 %v117
    %128 = vmatpush.msra.mxu0 %v116
    %129 = vmatpush.msra.mxu0 %v115
    %130 = vmatpush.msra.mxu0 %v114
    %131 = vmatpush.msra.mxu0 %v113
    %132 = vmatpush.msra.mxu0 %v112
    %133 = vmatpush.msra.mxu0 %v111
    %134 = vmatpush.msra.mxu0 %v110
    %135 = vmatpush.msra.mxu0 %v109
    %136 = vmatpush.msra.mxu0 %v108
    %137 = vmatpush.msra.mxu0 %v107
    %138 = vmatpush.msra.mxu0 %v106
    %139 = vmatpush.msra.mxu0 %v105
    %140 = vmatpush.msra.mxu0 %v104
    %141 = vmatmul.f32.gmra.mxu0 %v102
    %v142 = vpop.f32.mrf.mxu0
    %v143 = vadd.f32 %v123, %v142
    %144 = vdwg.mxu0
    %v145 = vmul.f32 %v60, %v143
    %v146 = vadd.f32 %v145, %v102
    %s147 = scalar_lea.vmem [#allocation5], 256
    %v148 = vld [vmem:[%s147] sm:$0xff]
    %v149 = vld [vmem:[%s147 + $0x8] sm:$0xff]
    %v150 = vld [vmem:[%s147 + $0x10] sm:$0xff]
    %v151 = vld [vmem:[%s147 + $0x18] sm:$0xff]
    %v152 = vld [vmem:[%s147 + $0x20] sm:$0xff]
    %v153 = vld [vmem:[%s147 + $0x28] sm:$0xff]
    %v154 = vld [vmem:[%s147 + $0x30] sm:$0xff]
    %v155 = vld [vmem:[%s147 + $0x38] sm:$0xff]
    %v156 = vld [vmem:[%s147 + $0x40] sm:$0xff]
    %v157 = vld [vmem:[%s147 + $0x48] sm:$0xff]
    %v158 = vld [vmem:[%s147 + $0x50] sm:$0xff]
    %v159 = vld [vmem:[%s147 + $0x58] sm:$0xff]
    %v160 = vld [vmem:[%s147 + $0x60] sm:$0xff]
    %v161 = vld [vmem:[%s147 + $0x68] sm:$0xff]
    %v162 = vld [vmem:[%s147 + $0x70] sm:$0xff]
    %v163 = vld [vmem:[%s147 + $0x78] sm:$0xff]
    %s164 = scalar_lea.vmem [#allocation7], 2
    %v165 = vld [vmem:[%s164] sm:$0x1]
    %v167 = vperm.slane %v165, 0
    %169 = vmatpush.msra.mxu0 %v163
    %170 = vmatpush.msra.mxu0 %v162
    %171 = vmatpush.msra.mxu0 %v161
    %172 = vmatpush.msra.mxu0 %v160
    %173 = vmatpush.msra.mxu0 %v159
    %174 = vmatpush.msra.mxu0 %v158
    %175 = vmatpush.msra.mxu0 %v157
    %176 = vmatpush.msra.mxu0 %v156
    %177 = vmatpush.msra.mxu0 %v155
    %178 = vmatpush.msra.mxu0 %v154
    %179 = vmatpush.msra.mxu0 %v153
    %180 = vmatpush.msra.mxu0 %v152
    %181 = vmatpush.msra.mxu0 %v151
    %182 = vmatpush.msra.mxu0 %v150
    %183 = vmatpush.msra.mxu0 %v149
    %184 = vmatpush.msra.mxu0 %v148
    %185 = vmatmul.f32.gmra.mxu0 %v146
    %v186 = vpop.f32.mrf.mxu0
    %v187 = vadd.f32 %v167, %v186
    %188 = vdwg.mxu0
    %v189 = vmul.f32 %v60, %v187
    %v190 = vadd.f32 %v189, %v146
    %191 = vst [vmem:[#allocation8] sm:$0xff] %v190
    // Predicated region
    $region26: #{tpu_custom_call.1} parent=1 // pred_check
      _
    $region27: #{tpu_custom_call.1} parent=1 // pred_check_branch
      %193 = sbr.rel (0) target = $region29
    $region28: #{tpu_custom_call.1} parent=1 // pred_region
      %195 = vsyncadd [#allocation4], 0
      %s197 = sshll.u32 [#allocation8], 4
      %s198 = int_to_ptr.vmem [resolvable:$true] %s197
      %s199 = sshll.u32 %s3, 4
      %s200 = int_to_ptr.hbm [resolvable:$true] %s199
      %202 = dma.vmem_to_hbm [thread:$0]  %s198, 128, %s200, [#allocation4]
    $region29: #{tpu_custom_call.1} parent=1 // pred_fallthru
      _
    // Predicated region
    $region30: #{tpu_custom_call.1} parent=1 // pred_check
      _
    $region31: #{tpu_custom_call.1} parent=1 // pred_check_branch
      %204 = sbr.rel (0) target = $region33
    $region32: #{tpu_custom_call.1} parent=1 // pred_region
      %206 = dma.done [#allocation4], 128
    $region33: #{tpu_custom_call.1} parent=1 // pred_fallthru
      _
    %207 = vsyncpa [#allocation3], 1
    %208 = vsyncpa [#allocation6], 1
    %209 = vsyncpa [#allocation4], 1

</llo_original>
